<compile_context>
chip_gen: v6e
topology: v6e:2x2x1
jax: 0.10.0
libtpu: 0.0.40
codegen_flags: <defaults>
</compile_context>

<pallas_src>
import functools

import jax
import jax.numpy as jnp
from jax.experimental import pallas as pl
from jax.experimental.pallas import tpu as pltpu


# ----------------------------------------------------------------------------
# Kernels
# ----------------------------------------------------------------------------

def _patching_fused_kernel(x_ref, o_ref, *, patch_size, nw, channels):
    """Single-pass kernel: raw NCHW block -> (ph pw c) patch rows.

    x_ref: (bt, C, rh, P, W)    NCHW with H split into (nh, P); lane dim = W
    o_ref: (bt, rh, nw, P*P*C)  lane-dense patch rows
    """
    P, C = patch_size, channels
    bt, rh = x_ref.shape[0], x_ref.shape[2]
    x = x_ref[...]                                  # (bt, C, rh, P, W)
    x = jnp.transpose(x, (0, 2, 3, 1, 4))           # (bt, rh, P, C, W)  minor (W) untouched
    x = jnp.swapaxes(x, -1, -2)                     # (bt, rh, P, W, C)  canonical last-2 swap
    x = x.reshape(bt * rh, P, nw, P * C)            # NHWC rows; split lanes W*C -> (nw, P*C)
    x = jnp.transpose(x, (0, 2, 1, 3))              # ph <-> w swap; minor P*C intact
    o_ref[...] = x.reshape(bt, rh, nw, P * P * C)   # lane-dense (nw, patch_dim) store


def _patching_swap_kernel(x_ref, o_ref, *, patch_size, nw, channels):
    """Two-pass fallback kernel (input already NHWC patch rows).

    x_ref: (bt, rh, P, W*C) ; o_ref: (bt, rh, nw, P*P*C)
    """
    P, C = patch_size, channels
    bt, rh = x_ref.shape[0], x_ref.shape[1]
    x = x_ref[...]
    x = x.reshape(bt * rh, P, nw, P * C)
    x = jnp.transpose(x, (0, 2, 1, 3))
    o_ref[...] = x.reshape(bt, rh, nw, P * P * C)


# ----------------------------------------------------------------------------
# Tiling / VMEM heuristics
# ----------------------------------------------------------------------------

def _divisors(n):
    return [d for d in range(1, n + 1) if n % d == 0]


def _round_up(n, m):
    return ((n + m - 1) // m) * m


def _chip_profile():
    """Generation-aware targets; v7x is identified by its 64 MiB/TC VMEM."""
    vmem_physical = 128 << 20
    try:
        info = pltpu.get_tpu_info()
        vmem_physical = int(getattr(info, "vmem_capacity_bytes", vmem_physical))
    except Exception:
        pass
    if vmem_physical <= (64 << 20):
        # v7x-class: ~3.2 TB/s per TC, 2 TCs/chip -> big steps + >=2 grid steps.
        return dict(target_block_bytes=12 << 20, vmem_cap=48 << 20, min_steps=2)
    # v5e / v6e class: 128 MiB physical VMEM, single TC.
    return dict(target_block_bytes=6 << 20, vmem_cap=96 << 20, min_steps=1)


def _choose_blocks(B, nh, row_bytes, target_bytes, min_steps):
    """Jointly pick (bt, rh) with bt|B, rh|nh: the largest block that fits
    `target_bytes` while keeping at least `min_steps` grid steps (so both
    TensorCores get work on 2-TC chips)."""
    cands = [(bt, rh, (B // bt) * (nh // rh), bt * rh * row_bytes)
             for rh in _divisors(nh) for bt in _divisors(B)]
    feasible = [c for c in cands if c[2] >= min_steps] or cands
    within = [c for c in feasible if c[3] <= target_bytes]
    if within:
        bt, rh, _, _ = max(within, key=lambda c: (c[3], c[1]))
    else:
        bt, rh, _, _ = min(feasible, key=lambda c: (c[3], -c[1]))
    return bt, rh


def _vmem_limit(in_tile_padded, out_tile_padded, cap):
    # Double-buffered in + out blocks, plus headroom for Mosaic relayout
    # temporaries inside the kernel body, plus a fixed margin.
    need = (2 * (in_tile_padded + out_tile_padded)
            + 2 * max(in_tile_padded, out_tile_padded) + (4 << 20))
    return int(min(cap, max(16 << 20, need)))


# ----------------------------------------------------------------------------
# pallas_call builders
# ----------------------------------------------------------------------------

def _patching_fused(x, patch_size, bt, rh, vmem_cap):
    B, C, H, W = x.shape
    P = patch_size
    nh, nw = H // P, W // P
    patch_dim = P * P * C
    itemsize = jnp.dtype(x.dtype).itemsize

    x5 = x.reshape(B, C, nh, P, W)                      # free view of NCHW

    in_pad = bt * C * rh * _round_up(P, 8) * _round_up(W, 128) * itemsize
    out_pad = bt * rh * _round_up(nw, 8) * _round_up(patch_dim, 128) * itemsize
    vmem_limit = _vmem_limit(in_pad, out_pad, vmem_cap)

    kernel = functools.partial(_patching_fused_kernel,
                               patch_size=P, nw=nw, channels=C)
    out4 = pl.pallas_call(
        kernel,
        out_shape=jax.ShapeDtypeStruct((B, nh, nw, patch_dim), x.dtype),
        grid_spec=pltpu.PrefetchScalarGridSpec(
            num_scalar_prefetch=0,
            grid=(B // bt, nh // rh),
            # Last two block dims equal the full array dims -> (8,128)-safe.
            in_specs=[pl.BlockSpec((bt, C, rh, P, W),
                                   lambda i, j: (i, 0, j, 0, 0))],
            out_specs=pl.BlockSpec((bt, rh, nw, patch_dim),
                                   lambda i, j: (i, j, 0, 0)),
        ),
        compiler_params=pltpu.CompilerParams(
            dimension_semantics=("parallel", "parallel"),
            vmem_limit_bytes=vmem_limit,
        ),
    )(x5)
    return out4.reshape(B, nh * nw, patch_dim)          # free view


def _patching_two_pass(x, patch_size, bt, rh, vmem_cap):
    B, C, H, W = x.shape
    P = patch_size
    nh, nw = H // P, W // P
    patch_dim = P * P * C
    itemsize = jnp.dtype(x.dtype).itemsize

    # Layout plumbing outside the kernel: NCHW -> NHWC once (one extra HBM
    # read+write pass), then a free reshape to lane-dense (B, nh, P, W*C).
    x_rows = jnp.transpose(x, (0, 2, 3, 1)).reshape(B, nh, P, W * C)

    in_pad = bt * rh * _round_up(P, 8) * _round_up(W * C, 128) * itemsize
    out_pad = bt * rh * _round_up(nw, 8) * _round_up(patch_dim, 128) * itemsize
    vmem_limit = _vmem_limit(in_pad, out_pad, vmem_cap)

    kernel = functools.partial(_patching_swap_kernel,
                               patch_size=P, nw=nw, channels=C)
    out4 = pl.pallas_call(
        kernel,
        out_shape=jax.ShapeDtypeStruct((B, nh, nw, patch_dim), x.dtype),
        grid_spec=pltpu.PrefetchScalarGridSpec(
            num_scalar_prefetch=0,
            grid=(B // bt, nh // rh),
            in_specs=[pl.BlockSpec((bt, rh, P, W * C),
                                   lambda i, j: (i, j, 0, 0))],
            out_specs=pl.BlockSpec((bt, rh, nw, patch_dim),
                                   lambda i, j: (i, j, 0, 0)),
        ),
        compiler_params=pltpu.CompilerParams(
            dimension_semantics=("parallel", "parallel"),
            vmem_limit_bytes=vmem_limit,
        ),
    )(x_rows)
    return out4.reshape(B, nh * nw, patch_dim)


# ----------------------------------------------------------------------------
# Public wrapper
# ----------------------------------------------------------------------------

def patching(x, patch_size, *, block_batch=None, block_rows=None,
             target_block_bytes=None, fuse_channel_interleave=True):
    """Pallas equivalent of Patching(patch_size).forward(x) with x in NCHW."""
    B, C, H, W = x.shape
    P = patch_size
    assert H % P == 0 and W % P == 0, "spatial dims must divide patch_size"
    nh = H // P
    itemsize = jnp.dtype(x.dtype).itemsize

    prof = _chip_profile()
    if target_block_bytes is None:
        target_block_bytes = prof["target_block_bytes"]

    # in + out bytes moved per (batch, patch-row) unit.
    row_bytes = 2 * P * W * C * itemsize

    if block_batch is None and block_rows is None:
        bt, rh = _choose_blocks(B, nh, row_bytes, target_block_bytes,
                                prof["min_steps"])
    else:
        rh = nh if block_rows is None else block_rows
        bt = 1 if block_batch is None else block_batch
        assert nh % rh == 0 and B % bt == 0

    if fuse_channel_interleave:
        try:
            return _patching_fused(x, P, bt, rh, prof["vmem_cap"])
        except Exception:
            # Mosaic could not lower the in-kernel channel interleave on this
            # backend; fall back to the proven two-pass path.
            pass
    return _patching_two_pass(x, P, bt, rh, prof["vmem_cap"])


def patching_ref(x, patch_size):
    """Pure-JAX reference (identical to the einops rearrange)."""
    B, C, H, W = x.shape
    P = patch_size
    nh, nw = H // P, W // P
    x = x.reshape(B, C, nh, P, nw, P)            # b c h ph w pw
    x = jnp.transpose(x, (0, 2, 4, 3, 5, 1))     # b h w ph pw c
    return x.reshape(B, nh * nw, P * P * C)


if __name__ == "__main__":
    key = jax.random.PRNGKey(0)
    B, C, H, W = 2, 4, 16, 16
    patch_size = 4
    x = jax.random.normal(key, (B, C, H, W), dtype=jnp.float32)

    ref = patching_ref(x, patch_size)
    expected_shape = (B, (H // patch_size) * (W // patch_size),
                      patch_size * patch_size * C)

    # Default auto-tiled, fused single-pass path.
    out = jax.block_until_ready(patching(x, patch_size))
    assert out.shape == ref.shape == expected_shape
    assert jnp.array_equal(out, ref), "Pallas output != reference rearrange"

    # Explicit multi-step (batch x patch-row) tiled grid, fused path.
    out_tiled = jax.block_until_ready(
        patching(x, patch_size, block_batch=1, block_rows=2))
    assert jnp.array_equal(out_tiled, ref), "tiled Pallas output != reference"

    # Two-pass fallback path (kept for backends where the in-kernel channel
    # interleave does not lower) -- exercised explicitly so it stays correct.
    out_fallback = jax.block_until_ready(
        patching(x, patch_size, fuse_channel_interleave=False))
    assert jnp.array_equal(out_fallback, ref), "fallback output != reference"

    print("KERNEL_OK")
</pallas_src>

<mosaic_0001>
module attributes {stable_mosaic.version = 11 : i64} {
  func.func @_patching_fused_kernel(%arg0: i32, %arg1: i32, %arg2: memref<2x4x4x4x16xf32, #tpu.memory_space<vmem>>, %arg3: memref<2x4x4x64xf32, #tpu.memory_space<vmem>>) attributes {dimension_semantics = [#tpu.dimension_semantics<parallel>, #tpu.dimension_semantics<parallel>], iteration_bounds = array<i64: 1, 1>, scalar_prefetch = 0 : i64, scratch_operands = 0 : i64, tpu.core_type = #tpu.core_type<tc>, window_params = [{transform_indices = @transform_0, window_bounds = array<i64: 2, 4, 4, 4, 16>}, {transform_indices = @transform_1, window_bounds = array<i64: 2, 4, 4, 64>}]} {
    %c0 = arith.constant 0 : index
    %c0_0 = arith.constant 0 : index
    %c0_1 = arith.constant 0 : index
    %c0_2 = arith.constant 0 : index
    %c0_3 = arith.constant 0 : index
    %0 = vector.load %arg2[%c0, %c0_0, %c0_1, %c0_2, %c0_3] : memref<2x4x4x4x16xf32, #tpu.memory_space<vmem>>, vector<2x4x4x4x16xf32>
    %1 = tpu.transpose %0, [0, 2, 3, 1, 4] : vector<2x4x4x4x16xf32> -> vector<2x4x4x4x16xf32>
    %2 = tpu.transpose %1, [0, 1, 2, 4, 3] : vector<2x4x4x4x16xf32> -> vector<2x4x4x16x4xf32>
    %3 = vector.shape_cast %2 : vector<2x4x4x16x4xf32> to vector<8x4x4x16xf32>
    %4 = tpu.transpose %3, [0, 2, 1, 3] : vector<8x4x4x16xf32> -> vector<8x4x4x16xf32>
    %5 = vector.shape_cast %4 : vector<8x4x4x16xf32> to vector<2x4x4x64xf32>
    %c0_4 = arith.constant 0 : index
    %c0_5 = arith.constant 0 : index
    %c0_6 = arith.constant 0 : index
    %c0_7 = arith.constant 0 : index
    %6 = vector.load %arg3[%c0_4, %c0_5, %c0_6, %c0_7] : memref<2x4x4x64xf32, #tpu.memory_space<vmem>>, vector<2x4x4x64xf32>
    tpu.vector_store %arg3[%c0_4, %c0_5, %c0_6, %c0_7], %5 {strides = array<i32>} : memref<2x4x4x64xf32, #tpu.memory_space<vmem>>, vector<2x4x4x64xf32>,
    return
  }
  func.func @transform_0(%arg0: i32, %arg1: i32) -> (i32, i32, i32, i32, i32) {
    %c0_i32 = arith.constant 0 : i32
    %c0_i32_0 = arith.constant 0 : i32
    %c0_i32_1 = arith.constant 0 : i32
    %c0_i32_2 = arith.constant 0 : i32
    return %arg0, %c0_i32, %arg1, %c0_i32_0, %c0_i32_1 : i32, i32, i32, i32, i32
  }
  func.func @transform_1(%arg0: i32, %arg1: i32) -> (i32, i32, i32, i32) {
    %c0_i32 = arith.constant 0 : i32
    %c0_i32_0 = arith.constant 0 : i32
    %c0_i32_1 = arith.constant 0 : i32
    return %arg0, %arg1, %c0_i32, %c0_i32_0 : i32, i32, i32, i32
  }
}

module attributes {stable_mosaic.version = 11 : i64} {
  func.func @_patching_swap_kernel(%arg0: i32, %arg1: i32, %arg2: memref<2x4x4x64xf32, #tpu.memory_space<vmem>>, %arg3: memref<2x4x4x64xf32, #tpu.memory_space<vmem>>) attributes {dimension_semantics = [#tpu.dimension_semantics<parallel>, #tpu.dimension_semantics<parallel>], iteration_bounds = array<i64: 1, 1>, scalar_prefetch = 0 : i64, scratch_operands = 0 : i64, tpu.core_type = #tpu.core_type<tc>, window_params = [{transform_indices = @transform_0, window_bounds = array<i64: 2, 4, 4, 64>}, {transform_indices = @transform_1, window_bounds = array<i64: 2, 4, 4, 64>}]} {
    %c0 = arith.constant 0 : index
    %c0_0 = arith.constant 0 : index
    %c0_1 = arith.constant 0 : index
    %c0_2 = arith.constant 0 : index
    %0 = vector.load %arg2[%c0, %c0_0, %c0_1, %c0_2] : memref<2x4x4x64xf32, #tpu.memory_space<vmem>>, vector<2x4x4x64xf32>
    %1 = vector.shape_cast %0 : vector<2x4x4x64xf32> to vector<8x4x4x16xf32>
    %2 = tpu.transpose %1, [0, 2, 1, 3] : vector<8x4x4x16xf32> -> vector<8x4x4x16xf32>
    %3 = vector.shape_cast %2 : vector<8x4x4x16xf32> to vector<2x4x4x64xf32>
    %c0_3 = arith.constant 0 : index
    %c0_4 = arith.constant 0 : index
    %c0_5 = arith.constant 0 : index
    %c0_6 = arith.constant 0 : index
    %4 = vector.load %arg3[%c0_3, %c0_4, %c0_5, %c0_6] : memref<2x4x4x64xf32, #tpu.memory_space<vmem>>, vector<2x4x4x64xf32>
    tpu.vector_store %arg3[%c0_3, %c0_4, %c0_5, %c0_6], %3 {strides = array<i32>} : memref<2x4x4x64xf32, #tpu.memory_space<vmem>>, vector<2x4x4x64xf32>,
    return
  }
  func.func @transform_0(%arg0: i32, %arg1: i32) -> (i32, i32, i32, i32) {
    %c0_i32 = arith.constant 0 : i32
    %c0_i32_0 = arith.constant 0 : i32
    %c0_i32_1 = arith.constant 0 : i32
    return %arg0, %arg1, %c0_i32, %c0_i32_0 : i32, i32, i32, i32
  }
  func.func @transform_1(%arg0: i32, %arg1: i32) -> (i32, i32, i32, i32) {
    %c0_i32 = arith.constant 0 : i32
    %c0_i32_0 = arith.constant 0 : i32
    %c0_i32_1 = arith.constant 0 : i32
    return %arg0, %arg1, %c0_i32, %c0_i32_0 : i32, i32, i32, i32
  }
}

</mosaic_0001>

<llo_original>
// kernel: tpu_custom_call.1
$region0: #{tpu_custom_call.1}
  #allocation0 [shape = 'u32[]', space=smem, size = 0x4, offset = 0x4, fixed_abs, tag = 'smem constant byte address 0x4 - core index']
  #allocation1 [shape = 'u32[144,128]{1,0:T(1,128)}', space=vmem, size = 0x12000, scoped, tag = 'internal scratch']
  %s0 = inlined_call_operand.hbm [shape: f32[2,4,4,64], index: 0, kind: input, shape index: {}]
  %s1 = inlined_call_operand.hbm [shape: f32[2,4,4,64], index: 1, kind: output, shape index: {}]
  %s2 = sld [smem:[#allocation0]]
  $region18: #{tpu_custom_call.1} parent=0
    _
  %s4 = ssub.s32 1, %s2
  %s5 = scalar_select 0, %s4, %s2
  $region1: #{tpu_custom_call.1} parent=0
    #allocation2 [shape = 'u8[16384]{0}', space=vmem, size = 0x4000, scoped, tag = 'input window, operand 0, single buffered']
    #allocation3 [shape = 's32[1]{0}', space=sflag, size = 0x4, scoped, tag = 'scoped memory for tpu_custom_call.1']
    #allocation4 [shape = 's32[1]{0}', space=sflag, size = 0x4, scoped, tag = 'scoped memory for tpu_custom_call.1']
    #allocation5 [shape = 'u8[16384]{0}', space=vmem, size = 0x4000, scoped, tag = 'output window, operand 0, single buffered']
    %6 = vsyncpa [#allocation3], 0
    %7 = vsyncpa [#allocation4], 0
    // Predicated region
    $region2: #{tpu_custom_call.1} parent=1 // pred_check
      _
    $region3: #{tpu_custom_call.1} parent=1 // pred_check_branch
      %9 = sbr.rel (0) target = $region5
    $region4: #{tpu_custom_call.1} parent=1 // pred_region
      %s11 = ssub.s32 512, 512
      %12 = vsyncadd [#allocation3], %s11
      %s13 = sshll.u32 [#allocation2], 4
      %s14 = int_to_ptr.vmem [resolvable:$true] %s13
      %19 = dma.hbm_to_vmem [thread:$0]  %s0, 512, %s14, [#allocation3], 64, 64, 4
    $region5: #{tpu_custom_call.1} parent=1 // pred_fallthru
      _
    // Predicated region
    $region6: #{tpu_custom_call.1} parent=1 // pred_check
      _
    $region7: #{tpu_custom_call.1} parent=1 // pred_check_branch
      %21 = sbr.rel (0) target = $region9
    $region8: #{tpu_custom_call.1} parent=1 // pred_region
      %22 = dma.done [#allocation3], 512
    $region9: #{tpu_custom_call.1} parent=1 // pred_fallthru
      _
    %v23 = vld [vmem:[#allocation2] sm:$0xf]
    %v24 = vld [vmem:[#allocation2 + $0x4] sm:$0xf]
    %v25 = vld [vmem:[#allocation2 + $0x8] sm:$0xf]
    %v26 = vld [vmem:[#allocation2 + $0xc] sm:$0xf]
    %v27 = vld [vmem:[#allocation2 + $0x10] sm:$0xf]
    %v28 = vld [vmem:[#allocation2 + $0x14] sm:$0xf]
    %v29 = vld [vmem:[#allocation2 + $0x18] sm:$0xf]
    %v30 = vld [vmem:[#allocation2 + $0x1c] sm:$0xf]
    %39 = vrot.lane.b32.xlu0 %v23, 112
    %v40 = vpop.permute.xlu0 %39
    %41 = vrot.lane.b32.xlu0 %v24, 112
    %v42 = vpop.permute.xlu0 %41
    %43 = vrot.lane.b32.xlu0 %v25, 112
    %v44 = vpop.permute.xlu0 %43
    %45 = vrot.lane.b32.xlu0 %v26, 112
    %v46 = vpop.permute.xlu0 %45
    %47 = vrot.lane.b32.xlu0 %v27, 112
    %v48 = vpop.permute.xlu0 %47
    %49 = vrot.lane.b32.xlu0 %v28, 112
    %v50 = vpop.permute.xlu0 %49
    %51 = vrot.lane.b32.xlu0 %v29, 112
    %v52 = vpop.permute.xlu0 %51
    %53 = vrot.lane.b32.xlu0 %v30, 112
    %v54 = vpop.permute.xlu0 %53
    %63 = vrot.lane.b32.xlu0 %v23, 96
    %v64 = vpop.permute.xlu0 %63
    %65 = vrot.lane.b32.xlu0 %v24, 96
    %v66 = vpop.permute.xlu0 %65
    %67 = vrot.lane.b32.xlu0 %v25, 96
    %v68 = vpop.permute.xlu0 %67
    %69 = vrot.lane.b32.xlu0 %v26, 96
    %v70 = vpop.permute.xlu0 %69
    %71 = vrot.lane.b32.xlu0 %v27, 96
    %v72 = vpop.permute.xlu0 %71
    %73 = vrot.lane.b32.xlu0 %v28, 96
    %v74 = vpop.permute.xlu0 %73
    %75 = vrot.lane.b32.xlu0 %v29, 96
    %v76 = vpop.permute.xlu0 %75
    %77 = vrot.lane.b32.xlu0 %v30, 96
    %v78 = vpop.permute.xlu0 %77
    %87 = vrot.lane.b32.xlu0 %v23, 80
    %v88 = vpop.permute.xlu0 %87
    %89 = vrot.lane.b32.xlu0 %v24, 80
    %v90 = vpop.permute.xlu0 %89
    %91 = vrot.lane.b32.xlu0 %v25, 80
    %v92 = vpop.permute.xlu0 %91
    %93 = vrot.lane.b32.xlu0 %v26, 80
    %v94 = vpop.permute.xlu0 %93
    %95 = vrot.lane.b32.xlu0 %v27, 80
    %v96 = vpop.permute.xlu0 %95
    %97 = vrot.lane.b32.xlu0 %v28, 80
    %v98 = vpop.permute.xlu0 %97
    %99 = vrot.lane.b32.xlu0 %v29, 80
    %v100 = vpop.permute.xlu0 %99
    %101 = vrot.lane.b32.xlu0 %v30, 80
    %v102 = vpop.permute.xlu0 %101
    %v111 = vcombine.low %v23, %v64
    %v113 = vunpack.c.l.s4 1983009808
    %v114 = vunpack.c.0.s8 %v113
    %v115 = vlaneseq
    %v116 = vshrl.u32 %v115, 7
    %v117 = vsub.s32 %v114, %v116
    %v118 = vrot.slane %v111, %v117
    %v119 = vcombine.low %v40, %v88
    %v121 = vunpack.c.l.s4 1983009808
    %v122 = vunpack.c.0.s8 %v121
    %v123 = vlaneseq
    %v124 = vshrl.u32 %v123, 7
    %v125 = vsub.s32 %v122, %v124
    %v126 = vrot.slane %v119, %v125
    %v127 = vcombine.low %v118, %v126
    %v128 = vcombine.high %v118, %v126
    %v130 = vunpack.c.l.s4 1934713408
    %v131 = vunpack.c.0.s8 %v130
    %v132 = vlaneseq
    %v133 = vshrl.u32 %v132, 7
    %v134 = vsub.s32 %v131, %v133
    %v135 = vrot.slane %v127, %v134
    %v137 = vunpack.c.l.s4 1934713408
    %v138 = vunpack.c.0.s8 %v137
    %v139 = vlaneseq
    %v140 = vshrl.u32 %v139, 7
    %v141 = vsub.s32 %v138, %v140
    %v142 = vrot.slane %v128, %v141
    %v143 = vcombine.high %v135, 0.0
    %v144 = vcombine.high %v142, 0.0
    %v145 = vcombine.low %v27, %v72
    %v147 = vunpack.c.l.s4 1983009808
    %v148 = vunpack.c.0.s8 %v147
    %v149 = vlaneseq
    %v150 = vshrl.u32 %v149, 7
    %v151 = vsub.s32 %v148, %v150
    %v152 = vrot.slane %v145, %v151
    %v153 = vcombine.low %v48, %v96
    %v155 = vunpack.c.l.s4 1983009808
    %v156 = vunpack.c.0.s8 %v155
    %v157 = vlaneseq
    %v158 = vshrl.u32 %v157, 7
    %v159 = vsub.s32 %v156, %v158
    %v160 = vrot.slane %v153, %v159
    %v161 = vcombine.low %v152, %v160
    %v162 = vcombine.high %v152, %v160
    %v164 = vunpack.c.l.s4 1934713408
    %v165 = vunpack.c.0.s8 %v164
    %v166 = vlaneseq
    %v167 = vshrl.u32 %v166, 7
    %v168 = vsub.s32 %v165, %v167
    %v169 = vrot.slane %v161, %v168
    %v171 = vunpack.c.l.s4 1934713408
    %v172 = vunpack.c.0.s8 %v171
    %v173 = vlaneseq
    %v174 = vshrl.u32 %v173, 7
    %v175 = vsub.s32 %v172, %v174
    %v176 = vrot.slane %v162, %v175
    %v177 = vcombine.high %v169, 0.0
    %v178 = vcombine.high %v176, 0.0
    %v179 = vcombine.low %v24, %v66
    %v181 = vunpack.c.l.s4 1983009808
    %v182 = vunpack.c.0.s8 %v181
    %v183 = vlaneseq
    %v184 = vshrl.u32 %v183, 7
    %v185 = vsub.s32 %v182, %v184
    %v186 = vrot.slane %v179, %v185
    %v187 = vcombine.low %v42, %v90
    %v189 = vunpack.c.l.s4 1983009808
    %v190 = vunpack.c.0.s8 %v189
    %v191 = vlaneseq
    %v192 = vshrl.u32 %v191, 7
    %v193 = vsub.s32 %v190, %v192
    %v194 = vrot.slane %v187, %v193
    %v195 = vcombine.low %v186, %v194
    %v196 = vcombine.high %v186, %v194
    %v198 = vunpack.c.l.s4 1934713408
    %v199 = vunpack.c.0.s8 %v198
    %v200 = vlaneseq
    %v201 = vshrl.u32 %v200, 7
    %v202 = vsub.s32 %v199, %v201
    %v203 = vrot.slane %v195, %v202
    %v205 = vunpack.c.l.s4 1934713408
    %v206 = vunpack.c.0.s8 %v205
    %v207 = vlaneseq
    %v208 = vshrl.u32 %v207, 7
    %v209 = vsub.s32 %v206, %v208
    %v210 = vrot.slane %v196, %v209
    %v211 = vcombine.high %v203, 0.0
    %v212 = vcombine.high %v210, 0.0
    %v213 = vcombine.low %v28, %v74
    %v215 = vunpack.c.l.s4 1983009808
    %v216 = vunpack.c.0.s8 %v215
    %v217 = vlaneseq
    %v218 = vshrl.u32 %v217, 7
    %v219 = vsub.s32 %v216, %v218
    %v220 = vrot.slane %v213, %v219
    %v221 = vcombine.low %v50, %v98
    %v223 = vunpack.c.l.s4 1983009808
    %v224 = vunpack.c.0.s8 %v223
    %v225 = vlaneseq
    %v226 = vshrl.u32 %v225, 7
    %v227 = vsub.s32 %v224, %v226
    %v228 = vrot.slane %v221, %v227
    %v229 = vcombine.low %v220, %v228
    %v230 = vcombine.high %v220, %v228
    %v232 = vunpack.c.l.s4 1934713408
    %v233 = vunpack.c.0.s8 %v232
    %v234 = vlaneseq
    %v235 = vshrl.u32 %v234, 7
    %v236 = vsub.s32 %v233, %v235
    %v237 = vrot.slane %v229, %v236
    %v239 = vunpack.c.l.s4 1934713408
    %v240 = vunpack.c.0.s8 %v239
    %v241 = vlaneseq
    %v242 = vshrl.u32 %v241, 7
    %v243 = vsub.s32 %v240, %v242
    %v244 = vrot.slane %v230, %v243
    %v245 = vcombine.high %v237, 0.0
    %v246 = vcombine.high %v244, 0.0
    %v247 = vcombine.low %v25, %v68
    %v249 = vunpack.c.l.s4 1983009808
    %v250 = vunpack.c.0.s8 %v249
    %v251 = vlaneseq
    %v252 = vshrl.u32 %v251, 7
    %v253 = vsub.s32 %v250, %v252
    %v254 = vrot.slane %v247, %v253
    %v255 = vcombine.low %v44, %v92
    %v257 = vunpack.c.l.s4 1983009808
    %v258 = vunpack.c.0.s8 %v257
    %v259 = vlaneseq
    %v260 = vshrl.u32 %v259, 7
    %v261 = vsub.s32 %v258, %v260
    %v262 = vrot.slane %v255, %v261
    %v263 = vcombine.low %v254, %v262
    %v264 = vcombine.high %v254, %v262
    %v266 = vunpack.c.l.s4 1934713408
    %v267 = vunpack.c.0.s8 %v266
    %v268 = vlaneseq
    %v269 = vshrl.u32 %v268, 7
    %v270 = vsub.s32 %v267, %v269
    %v271 = vrot.slane %v263, %v270
    %v273 = vunpack.c.l.s4 1934713408
    %v274 = vunpack.c.0.s8 %v273
    %v275 = vlaneseq
    %v276 = vshrl.u32 %v275, 7
    %v277 = vsub.s32 %v274, %v276
    %v278 = vrot.slane %v264, %v277
    %v279 = vcombine.high %v271, 0.0
    %v280 = vcombine.high %v278, 0.0
    %v281 = vcombine.low %v29, %v76
    %v283 = vunpack.c.l.s4 1983009808
    %v284 = vunpack.c.0.s8 %v283
    %v285 = vlaneseq
    %v286 = vshrl.u32 %v285, 7
    %v287 = vsub.s32 %v284, %v286
    %v288 = vrot.slane %v281, %v287
    %v289 = vcombine.low %v52, %v100
    %v291 = vunpack.c.l.s4 1983009808
    %v292 = vunpack.c.0.s8 %v291
    %v293 = vlaneseq
    %v294 = vshrl.u32 %v293, 7
    %v295 = vsub.s32 %v292, %v294
    %v296 = vrot.slane %v289, %v295
    %v297 = vcombine.low %v288, %v296
    %v298 = vcombine.high %v288, %v296
    %v300 = vunpack.c.l.s4 1934713408
    %v301 = vunpack.c.0.s8 %v300
    %v302 = vlaneseq
    %v303 = vshrl.u32 %v302, 7
    %v304 = vsub.s32 %v301, %v303
    %v305 = vrot.slane %v297, %v304
    %v307 = vunpack.c.l.s4 1934713408
    %v308 = vunpack.c.0.s8 %v307
    %v309 = vlaneseq
    %v310 = vshrl.u32 %v309, 7
    %v311 = vsub.s32 %v308, %v310
    %v312 = vrot.slane %v298, %v311
    %v313 = vcombine.high %v305, 0.0
    %v314 = vcombine.high %v312, 0.0
    %v315 = vcombine.low %v26, %v70
    %v317 = vunpack.c.l.s4 1983009808
    %v318 = vunpack.c.0.s8 %v317
    %v319 = vlaneseq
    %v320 = vshrl.u32 %v319, 7
    %v321 = vsub.s32 %v318, %v320
    %v322 = vrot.slane %v315, %v321
    %v323 = vcombine.low %v46, %v94
    %v325 = vunpack.c.l.s4 1983009808
    %v326 = vunpack.c.0.s8 %v325
    %v327 = vlaneseq
    %v328 = vshrl.u32 %v327, 7
    %v329 = vsub.s32 %v326, %v328
    %v330 = vrot.slane %v323, %v329
    %v331 = vcombine.low %v322, %v330
    %v332 = vcombine.high %v322, %v330
    %v334 = vunpack.c.l.s4 1934713408
    %v335 = vunpack.c.0.s8 %v334
    %v336 = vlaneseq
    %v337 = vshrl.u32 %v336, 7
    %v338 = vsub.s32 %v335, %v337
    %v339 = vrot.slane %v331, %v338
    %v341 = vunpack.c.l.s4 1934713408
    %v342 = vunpack.c.0.s8 %v341
    %v343 = vlaneseq
    %v344 = vshrl.u32 %v343, 7
    %v345 = vsub.s32 %v342, %v344
    %v346 = vrot.slane %v332, %v345
    %v347 = vcombine.high %v339, 0.0
    %v348 = vcombine.high %v346, 0.0
    %v349 = vcombine.low %v30, %v78
    %v351 = vunpack.c.l.s4 1983009808
    %v352 = vunpack.c.0.s8 %v351
    %v353 = vlaneseq
    %v354 = vshrl.u32 %v353, 7
    %v355 = vsub.s32 %v352, %v354
    %v356 = vrot.slane %v349, %v355
    %v357 = vcombine.low %v54, %v102
    %v359 = vunpack.c.l.s4 1983009808
    %v360 = vunpack.c.0.s8 %v359
    %v361 = vlaneseq
    %v362 = vshrl.u32 %v361, 7
    %v363 = vsub.s32 %v360, %v362
    %v364 = vrot.slane %v357, %v363
    %v365 = vcombine.low %v356, %v364
    %v366 = vcombine.high %v356, %v364
    %v368 = vunpack.c.l.s4 1934713408
    %v369 = vunpack.c.0.s8 %v368
    %v370 = vlaneseq
    %v371 = vshrl.u32 %v370, 7
    %v372 = vsub.s32 %v369, %v371
    %v373 = vrot.slane %v365, %v372
    %v375 = vunpack.c.l.s4 1934713408
    %v376 = vunpack.c.0.s8 %v375
    %v377 = vlaneseq
    %v378 = vshrl.u32 %v377, 7
    %v379 = vsub.s32 %v376, %v378
    %v380 = vrot.slane %v366, %v379
    %v381 = vcombine.high %v373, 0.0
    %v382 = vcombine.high %v380, 0.0
    %v383 = vcombine.low %v135, %v142
    %v385 = vunpack.c.l.s4 1983009808
    %v386 = vunpack.c.0.s8 %v385
    %v387 = vlaneseq
    %v388 = vshrl.u32 %v387, 7
    %v389 = vsub.s32 %v386, %v388
    %v390 = vrot.slane %v383, %v389
    %v391 = vcombine.low %v143, %v144
    %v393 = vunpack.c.l.s4 1983009808
    %v394 = vunpack.c.0.s8 %v393
    %v395 = vlaneseq
    %v396 = vshrl.u32 %v395, 7
    %v397 = vsub.s32 %v394, %v396
    %v398 = vrot.slane %v391, %v397
    %v399 = vcombine.low %v390, %v398
    %v400 = vcombine.high %v390, %v398
    %v402 = vunpack.c.l.s4 1934713408
    %v403 = vunpack.c.0.s8 %v402
    %v404 = vlaneseq
    %v405 = vshrl.u32 %v404, 7
    %v406 = vsub.s32 %v403, %v405
    %v407 = vrot.slane %v399, %v406
    %v409 = vunpack.c.l.s4 1934713408
    %v410 = vunpack.c.0.s8 %v409
    %v411 = vlaneseq
    %v412 = vshrl.u32 %v411, 7
    %v413 = vsub.s32 %v410, %v412
    %v414 = vrot.slane %v400, %v413
    %v415 = vcombine.high %v407, 0.0
    %v416 = vcombine.high %v414, 0.0
    %v417 = vcombine.low %v203, %v210
    %v419 = vunpack.c.l.s4 1983009808
    %v420 = vunpack.c.0.s8 %v419
    %v421 = vlaneseq
    %v422 = vshrl.u32 %v421, 7
    %v423 = vsub.s32 %v420, %v422
    %v424 = vrot.slane %v417, %v423
    %v425 = vcombine.low %v211, %v212
    %v427 = vunpack.c.l.s4 1983009808
    %v428 = vunpack.c.0.s8 %v427
    %v429 = vlaneseq
    %v430 = vshrl.u32 %v429, 7
    %v431 = vsub.s32 %v428, %v430
    %v432 = vrot.slane %v425, %v431
    %v433 = vcombine.low %v424, %v432
    %v434 = vcombine.high %v424, %v432
    %v436 = vunpack.c.l.s4 1934713408
    %v437 = vunpack.c.0.s8 %v436
    %v438 = vlaneseq
    %v439 = vshrl.u32 %v438, 7
    %v440 = vsub.s32 %v437, %v439
    %v441 = vrot.slane %v433, %v440
    %v443 = vunpack.c.l.s4 1934713408
    %v444 = vunpack.c.0.s8 %v443
    %v445 = vlaneseq
    %v446 = vshrl.u32 %v445, 7
    %v447 = vsub.s32 %v444, %v446
    %v448 = vrot.slane %v434, %v447
    %v449 = vcombine.high %v441, 0.0
    %v450 = vcombine.high %v448, 0.0
    %v451 = vcombine.low %v271, %v278
    %v453 = vunpack.c.l.s4 1983009808
    %v454 = vunpack.c.0.s8 %v453
    %v455 = vlaneseq
    %v456 = vshrl.u32 %v455, 7
    %v457 = vsub.s32 %v454, %v456
    %v458 = vrot.slane %v451, %v457
    %v459 = vcombine.low %v279, %v280
    %v461 = vunpack.c.l.s4 1983009808
    %v462 = vunpack.c.0.s8 %v461
    %v463 = vlaneseq
    %v464 = vshrl.u32 %v463, 7
    %v465 = vsub.s32 %v462, %v464
    %v466 = vrot.slane %v459, %v465
    %v467 = vcombine.low %v458, %v466
    %v468 = vcombine.high %v458, %v466
    %v470 = vunpack.c.l.s4 1934713408
    %v471 = vunpack.c.0.s8 %v470
    %v472 = vlaneseq
    %v473 = vshrl.u32 %v472, 7
    %v474 = vsub.s32 %v471, %v473
    %v475 = vrot.slane %v467, %v474
    %v477 = vunpack.c.l.s4 1934713408
    %v478 = vunpack.c.0.s8 %v477
    %v479 = vlaneseq
    %v480 = vshrl.u32 %v479, 7
    %v481 = vsub.s32 %v478, %v480
    %v482 = vrot.slane %v468, %v481
    %v483 = vcombine.high %v475, 0.0
    %v484 = vcombine.high %v482, 0.0
    %v485 = vcombine.low %v339, %v346
    %v487 = vunpack.c.l.s4 1983009808
    %v488 = vunpack.c.0.s8 %v487
    %v489 = vlaneseq
    %v490 = vshrl.u32 %v489, 7
    %v491 = vsub.s32 %v488, %v490
    %v492 = vrot.slane %v485, %v491
    %v493 = vcombine.low %v347, %v348
    %v495 = vunpack.c.l.s4 1983009808
    %v496 = vunpack.c.0.s8 %v495
    %v497 = vlaneseq
    %v498 = vshrl.u32 %v497, 7
    %v499 = vsub.s32 %v496, %v498
    %v500 = vrot.slane %v493, %v499
    %v501 = vcombine.low %v492, %v500
    %v502 = vcombine.high %v492, %v500
    %v504 = vunpack.c.l.s4 1934713408
    %v505 = vunpack.c.0.s8 %v504
    %v506 = vlaneseq
    %v507 = vshrl.u32 %v506, 7
    %v508 = vsub.s32 %v505, %v507
    %v509 = vrot.slane %v501, %v508
    %v511 = vunpack.c.l.s4 1934713408
    %v512 = vunpack.c.0.s8 %v511
    %v513 = vlaneseq
    %v514 = vshrl.u32 %v513, 7
    %v515 = vsub.s32 %v512, %v514
    %v516 = vrot.slane %v502, %v515
    %v517 = vcombine.high %v509, 0.0
    %v518 = vcombine.high %v516, 0.0
    %v519 = vcombine.low %v169, %v176
    %v521 = vunpack.c.l.s4 1983009808
    %v522 = vunpack.c.0.s8 %v521
    %v523 = vlaneseq
    %v524 = vshrl.u32 %v523, 7
    %v525 = vsub.s32 %v522, %v524
    %v526 = vrot.slane %v519, %v525
    %v527 = vcombine.low %v177, %v178
    %v529 = vunpack.c.l.s4 1983009808
    %v530 = vunpack.c.0.s8 %v529
    %v531 = vlaneseq
    %v532 = vshrl.u32 %v531, 7
    %v533 = vsub.s32 %v530, %v532
    %v534 = vrot.slane %v527, %v533
    %v535 = vcombine.low %v526, %v534
    %v536 = vcombine.high %v526, %v534
    %v538 = vunpack.c.l.s4 1934713408
    %v539 = vunpack.c.0.s8 %v538
    %v540 = vlaneseq
    %v541 = vshrl.u32 %v540, 7
    %v542 = vsub.s32 %v539, %v541
    %v543 = vrot.slane %v535, %v542
    %v545 = vunpack.c.l.s4 1934713408
    %v546 = vunpack.c.0.s8 %v545
    %v547 = vlaneseq
    %v548 = vshrl.u32 %v547, 7
    %v549 = vsub.s32 %v546, %v548
    %v550 = vrot.slane %v536, %v549
    %v551 = vcombine.high %v543, 0.0
    %v552 = vcombine.high %v550, 0.0
    %v553 = vcombine.low %v237, %v244
    %v555 = vunpack.c.l.s4 1983009808
    %v556 = vunpack.c.0.s8 %v555
    %v557 = vlaneseq
    %v558 = vshrl.u32 %v557, 7
    %v559 = vsub.s32 %v556, %v558
    %v560 = vrot.slane %v553, %v559
    %v561 = vcombine.low %v245, %v246
    %v563 = vunpack.c.l.s4 1983009808
    %v564 = vunpack.c.0.s8 %v563
    %v565 = vlaneseq
    %v566 = vshrl.u32 %v565, 7
    %v567 = vsub.s32 %v564, %v566
    %v568 = vrot.slane %v561, %v567
    %v569 = vcombine.low %v560, %v568
    %v570 = vcombine.high %v560, %v568
    %v572 = vunpack.c.l.s4 1934713408
    %v573 = vunpack.c.0.s8 %v572
    %v574 = vlaneseq
    %v575 = vshrl.u32 %v574, 7
    %v576 = vsub.s32 %v573, %v575
    %v577 = vrot.slane %v569, %v576
    %v579 = vunpack.c.l.s4 1934713408
    %v580 = vunpack.c.0.s8 %v579
    %v581 = vlaneseq
    %v582 = vshrl.u32 %v581, 7
    %v583 = vsub.s32 %v580, %v582
    %v584 = vrot.slane %v570, %v583
    %v585 = vcombine.high %v577, 0.0
    %v586 = vcombine.high %v584, 0.0
    %v587 = vcombine.low %v305, %v312
    %v589 = vunpack.c.l.s4 1983009808
    %v590 = vunpack.c.0.s8 %v589
    %v591 = vlaneseq
    %v592 = vshrl.u32 %v591, 7
    %v593 = vsub.s32 %v590, %v592
    %v594 = vrot.slane %v587, %v593
    %v595 = vcombine.low %v313, %v314
    %v597 = vunpack.c.l.s4 1983009808
    %v598 = vunpack.c.0.s8 %v597
    %v599 = vlaneseq
    %v600 = vshrl.u32 %v599, 7
    %v601 = vsub.s32 %v598, %v600
    %v602 = vrot.slane %v595, %v601
    %v603 = vcombine.low %v594, %v602
    %v604 = vcombine.high %v594, %v602
    %v606 = vunpack.c.l.s4 1934713408
    %v607 = vunpack.c.0.s8 %v606
    %v608 = vlaneseq
    %v609 = vshrl.u32 %v608, 7
    %v610 = vsub.s32 %v607, %v609
    %v611 = vrot.slane %v603, %v610
    %v613 = vunpack.c.l.s4 1934713408
    %v614 = vunpack.c.0.s8 %v613
    %v615 = vlaneseq
    %v616 = vshrl.u32 %v615, 7
    %v617 = vsub.s32 %v614, %v616
    %v618 = vrot.slane %v604, %v617
    %v619 = vcombine.high %v611, 0.0
    %v620 = vcombine.high %v618, 0.0
    %v621 = vcombine.low %v373, %v380
    %v623 = vunpack.c.l.s4 1983009808
    %v624 = vunpack.c.0.s8 %v623
    %v625 = vlaneseq
    %v626 = vshrl.u32 %v625, 7
    %v627 = vsub.s32 %v624, %v626
    %v628 = vrot.slane %v621, %v627
    %v629 = vcombine.low %v381, %v382
    %v631 = vunpack.c.l.s4 1983009808
    %v632 = vunpack.c.0.s8 %v631
    %v633 = vlaneseq
    %v634 = vshrl.u32 %v633, 7
    %v635 = vsub.s32 %v632, %v634
    %v636 = vrot.slane %v629, %v635
    %v637 = vcombine.low %v628, %v636
    %v638 = vcombine.high %v628, %v636
    %v640 = vunpack.c.l.s4 1934713408
    %v641 = vunpack.c.0.s8 %v640
    %v642 = vlaneseq
    %v643 = vshrl.u32 %v642, 7
    %v644 = vsub.s32 %v641, %v643
    %v645 = vrot.slane %v637, %v644
    %v647 = vunpack.c.l.s4 1934713408
    %v648 = vunpack.c.0.s8 %v647
    %v649 = vlaneseq
    %v650 = vshrl.u32 %v649, 7
    %v651 = vsub.s32 %v648, %v650
    %v652 = vrot.slane %v638, %v651
    %v653 = vcombine.high %v645, 0.0
    %v654 = vcombine.high %v652, 0.0
    %v655 = vcombine.low %v407, %v414
    %v657 = vunpack.c.l.s4 1983009808
    %v658 = vunpack.c.0.s8 %v657
    %v659 = vlaneseq
    %v660 = vshrl.u32 %v659, 7
    %v661 = vsub.s32 %v658, %v660
    %v662 = vrot.slane %v655, %v661
    %v663 = vcombine.low %v415, %v416
    %v665 = vunpack.c.l.s4 1983009808
    %v666 = vunpack.c.0.s8 %v665
    %v667 = vlaneseq
    %v668 = vshrl.u32 %v667, 7
    %v669 = vsub.s32 %v666, %v668
    %v670 = vrot.slane %v663, %v669
    %v671 = vcombine.low %v662, %v670
    %v672 = vcombine.high %v662, %v670
    %v674 = vunpack.c.l.s4 1934713408
    %v675 = vunpack.c.0.s8 %v674
    %v676 = vlaneseq
    %v677 = vshrl.u32 %v676, 7
    %v678 = vsub.s32 %v675, %v677
    %v679 = vrot.slane %v671, %v678
    %v681 = vunpack.c.l.s4 1934713408
    %v682 = vunpack.c.0.s8 %v681
    %v683 = vlaneseq
    %v684 = vshrl.u32 %v683, 7
    %v685 = vsub.s32 %v682, %v684
    %v686 = vrot.slane %v672, %v685
    %v687 = vcombine.high %v679, 0.0
    %v688 = vcombine.high %v686, 0.0
    %v689 = vcombine.low %v441, %v448
    %v691 = vunpack.c.l.s4 1983009808
    %v692 = vunpack.c.0.s8 %v691
    %v693 = vlaneseq
    %v694 = vshrl.u32 %v693, 7
    %v695 = vsub.s32 %v692, %v694
    %v696 = vrot.slane %v689, %v695
    %v697 = vcombine.low %v449, %v450
    %v699 = vunpack.c.l.s4 1983009808
    %v700 = vunpack.c.0.s8 %v699
    %v701 = vlaneseq
    %v702 = vshrl.u32 %v701, 7
    %v703 = vsub.s32 %v700, %v702
    %v704 = vrot.slane %v697, %v703
    %v705 = vcombine.low %v696, %v704
    %v706 = vcombine.high %v696, %v704
    %v708 = vunpack.c.l.s4 1934713408
    %v709 = vunpack.c.0.s8 %v708
    %v710 = vlaneseq
    %v711 = vshrl.u32 %v710, 7
    %v712 = vsub.s32 %v709, %v711
    %v713 = vrot.slane %v705, %v712
    %v715 = vunpack.c.l.s4 1934713408
    %v716 = vunpack.c.0.s8 %v715
    %v717 = vlaneseq
    %v718 = vshrl.u32 %v717, 7
    %v719 = vsub.s32 %v716, %v718
    %v720 = vrot.slane %v706, %v719
    %v721 = vcombine.high %v713, 0.0
    %v722 = vcombine.high %v720, 0.0
    %v723 = vcombine.low %v475, %v482
    %v725 = vunpack.c.l.s4 1983009808
    %v726 = vunpack.c.0.s8 %v725
    %v727 = vlaneseq
    %v728 = vshrl.u32 %v727, 7
    %v729 = vsub.s32 %v726, %v728
    %v730 = vrot.slane %v723, %v729
    %v731 = vcombine.low %v483, %v484
    %v733 = vunpack.c.l.s4 1983009808
    %v734 = vunpack.c.0.s8 %v733
    %v735 = vlaneseq
    %v736 = vshrl.u32 %v735, 7
    %v737 = vsub.s32 %v734, %v736
    %v738 = vrot.slane %v731, %v737
    %v739 = vcombine.low %v730, %v738
    %v740 = vcombine.high %v730, %v738
    %v742 = vunpack.c.l.s4 1934713408
    %v743 = vunpack.c.0.s8 %v742
    %v744 = vlaneseq
    %v745 = vshrl.u32 %v744, 7
    %v746 = vsub.s32 %v743, %v745
    %v747 = vrot.slane %v739, %v746
    %v749 = vunpack.c.l.s4 1934713408
    %v750 = vunpack.c.0.s8 %v749
    %v751 = vlaneseq
    %v752 = vshrl.u32 %v751, 7
    %v753 = vsub.s32 %v750, %v752
    %v754 = vrot.slane %v740, %v753
    %v755 = vcombine.high %v747, 0.0
    %v756 = vcombine.high %v754, 0.0
    %v757 = vcombine.low %v509, %v516
    %v759 = vunpack.c.l.s4 1983009808
    %v760 = vunpack.c.0.s8 %v759
    %v761 = vlaneseq
    %v762 = vshrl.u32 %v761, 7
    %v763 = vsub.s32 %v760, %v762
    %v764 = vrot.slane %v757, %v763
    %v765 = vcombine.low %v517, %v518
    %v767 = vunpack.c.l.s4 1983009808
    %v768 = vunpack.c.0.s8 %v767
    %v769 = vlaneseq
    %v770 = vshrl.u32 %v769, 7
    %v771 = vsub.s32 %v768, %v770
    %v772 = vrot.slane %v765, %v771
    %v773 = vcombine.low %v764, %v772
    %v774 = vcombine.high %v764, %v772
    %v776 = vunpack.c.l.s4 1934713408
    %v777 = vunpack.c.0.s8 %v776
    %v778 = vlaneseq
    %v779 = vshrl.u32 %v778, 7
    %v780 = vsub.s32 %v777, %v779
    %v781 = vrot.slane %v773, %v780
    %v783 = vunpack.c.l.s4 1934713408
    %v784 = vunpack.c.0.s8 %v783
    %v785 = vlaneseq
    %v786 = vshrl.u32 %v785, 7
    %v787 = vsub.s32 %v784, %v786
    %v788 = vrot.slane %v774, %v787
    %v789 = vcombine.high %v781, 0.0
    %v790 = vcombine.high %v788, 0.0
    %v791 = vcombine.low %v543, %v550
    %v793 = vunpack.c.l.s4 1983009808
    %v794 = vunpack.c.0.s8 %v793
    %v795 = vlaneseq
    %v796 = vshrl.u32 %v795, 7
    %v797 = vsub.s32 %v794, %v796
    %v798 = vrot.slane %v791, %v797
    %v799 = vcombine.low %v551, %v552
    %v801 = vunpack.c.l.s4 1983009808
    %v802 = vunpack.c.0.s8 %v801
    %v803 = vlaneseq
    %v804 = vshrl.u32 %v803, 7
    %v805 = vsub.s32 %v802, %v804
    %v806 = vrot.slane %v799, %v805
    %v807 = vcombine.low %v798, %v806
    %v808 = vcombine.high %v798, %v806
    %v810 = vunpack.c.l.s4 1934713408
    %v811 = vunpack.c.0.s8 %v810
    %v812 = vlaneseq
    %v813 = vshrl.u32 %v812, 7
    %v814 = vsub.s32 %v811, %v813
    %v815 = vrot.slane %v807, %v814
    %v817 = vunpack.c.l.s4 1934713408
    %v818 = vunpack.c.0.s8 %v817
    %v819 = vlaneseq
    %v820 = vshrl.u32 %v819, 7
    %v821 = vsub.s32 %v818, %v820
    %v822 = vrot.slane %v808, %v821
    %v823 = vcombine.high %v815, 0.0
    %v824 = vcombine.high %v822, 0.0
    %v825 = vcombine.low %v577, %v584
    %v827 = vunpack.c.l.s4 1983009808
    %v828 = vunpack.c.0.s8 %v827
    %v829 = vlaneseq
    %v830 = vshrl.u32 %v829, 7
    %v831 = vsub.s32 %v828, %v830
    %v832 = vrot.slane %v825, %v831
    %v833 = vcombine.low %v585, %v586
    %v835 = vunpack.c.l.s4 1983009808
    %v836 = vunpack.c.0.s8 %v835
    %v837 = vlaneseq
    %v838 = vshrl.u32 %v837, 7
    %v839 = vsub.s32 %v836, %v838
    %v840 = vrot.slane %v833, %v839
    %v841 = vcombine.low %v832, %v840
    %v842 = vcombine.high %v832, %v840
    %v844 = vunpack.c.l.s4 1934713408
    %v845 = vunpack.c.0.s8 %v844
    %v846 = vlaneseq
    %v847 = vshrl.u32 %v846, 7
    %v848 = vsub.s32 %v845, %v847
    %v849 = vrot.slane %v841, %v848
    %v851 = vunpack.c.l.s4 1934713408
    %v852 = vunpack.c.0.s8 %v851
    %v853 = vlaneseq
    %v854 = vshrl.u32 %v853, 7
    %v855 = vsub.s32 %v852, %v854
    %v856 = vrot.slane %v842, %v855
    %v857 = vcombine.high %v849, 0.0
    %v858 = vcombine.high %v856, 0.0
    %v859 = vcombine.low %v611, %v618
    %v861 = vunpack.c.l.s4 1983009808
    %v862 = vunpack.c.0.s8 %v861
    %v863 = vlaneseq
    %v864 = vshrl.u32 %v863, 7
    %v865 = vsub.s32 %v862, %v864
    %v866 = vrot.slane %v859, %v865
    %v867 = vcombine.low %v619, %v620
    %v869 = vunpack.c.l.s4 1983009808
    %v870 = vunpack.c.0.s8 %v869
    %v871 = vlaneseq
    %v872 = vshrl.u32 %v871, 7
    %v873 = vsub.s32 %v870, %v872
    %v874 = vrot.slane %v867, %v873
    %v875 = vcombine.low %v866, %v874
    %v876 = vcombine.high %v866, %v874
    %v878 = vunpack.c.l.s4 1934713408
    %v879 = vunpack.c.0.s8 %v878
    %v880 = vlaneseq
    %v881 = vshrl.u32 %v880, 7
    %v882 = vsub.s32 %v879, %v881
    %v883 = vrot.slane %v875, %v882
    %v885 = vunpack.c.l.s4 1934713408
    %v886 = vunpack.c.0.s8 %v885
    %v887 = vlaneseq
    %v888 = vshrl.u32 %v887, 7
    %v889 = vsub.s32 %v886, %v888
    %v890 = vrot.slane %v876, %v889
    %v891 = vcombine.high %v883, 0.0
    %v892 = vcombine.high %v890, 0.0
    %v893 = vcombine.low %v645, %v652
    %v895 = vunpack.c.l.s4 1983009808
    %v896 = vunpack.c.0.s8 %v895
    %v897 = vlaneseq
    %v898 = vshrl.u32 %v897, 7
    %v899 = vsub.s32 %v896, %v898
    %v900 = vrot.slane %v893, %v899
    %v901 = vcombine.low %v653, %v654
    %v903 = vunpack.c.l.s4 1983009808
    %v904 = vunpack.c.0.s8 %v903
    %v905 = vlaneseq
    %v906 = vshrl.u32 %v905, 7
    %v907 = vsub.s32 %v904, %v906
    %v908 = vrot.slane %v901, %v907
    %v909 = vcombine.low %v900, %v908
    %v910 = vcombine.high %v900, %v908
    %v912 = vunpack.c.l.s4 1934713408
    %v913 = vunpack.c.0.s8 %v912
    %v914 = vlaneseq
    %v915 = vshrl.u32 %v914, 7
    %v916 = vsub.s32 %v913, %v915
    %v917 = vrot.slane %v909, %v916
    %v919 = vunpack.c.l.s4 1934713408
    %v920 = vunpack.c.0.s8 %v919
    %v921 = vlaneseq
    %v922 = vshrl.u32 %v921, 7
    %v923 = vsub.s32 %v920, %v922
    %v924 = vrot.slane %v910, %v923
    %v925 = vcombine.high %v917, 0.0
    %v926 = vcombine.high %v924, 0.0
    %935 = vrot.lane.b32.xlu0 %v687, 16
    %v936 = vpop.permute.xlu0 %935
    %937 = vrot.lane.b32.xlu0 %v721, 16
    %v938 = vpop.permute.xlu0 %937
    %939 = vrot.lane.b32.xlu0 %v755, 16
    %v940 = vpop.permute.xlu0 %939
    %941 = vrot.lane.b32.xlu0 %v789, 16
    %v942 = vpop.permute.xlu0 %941
    %943 = vrot.lane.b32.xlu0 %v823, 16
    %v944 = vpop.permute.xlu0 %943
    %945 = vrot.lane.b32.xlu0 %v857, 16
    %v946 = vpop.permute.xlu0 %945
    %947 = vrot.lane.b32.xlu0 %v891, 16
    %v948 = vpop.permute.xlu0 %947
    %949 = vrot.lane.b32.xlu0 %v925, 16
    %v950 = vpop.permute.xlu0 %949
    %967 = vrot.lane.b32.xlu0 %v686, 32
    %v968 = vpop.permute.xlu0 %967
    %969 = vrot.lane.b32.xlu0 %v720, 32
    %v970 = vpop.permute.xlu0 %969
    %971 = vrot.lane.b32.xlu0 %v754, 32
    %v972 = vpop.permute.xlu0 %971
    %973 = vrot.lane.b32.xlu0 %v788, 32
    %v974 = vpop.permute.xlu0 %973
    %975 = vrot.lane.b32.xlu0 %v822, 32
    %v976 = vpop.permute.xlu0 %975
    %977 = vrot.lane.b32.xlu0 %v856, 32
    %v978 = vpop.permute.xlu0 %977
    %979 = vrot.lane.b32.xlu0 %v890, 32
    %v980 = vpop.permute.xlu0 %979
    %981 = vrot.lane.b32.xlu0 %v924, 32
    %v982 = vpop.permute.xlu0 %981
    %999 = vrot.lane.b32.xlu0 %v688, 48
    %v1000 = vpop.permute.xlu0 %999
    %1001 = vrot.lane.b32.xlu0 %v722, 48
    %v1002 = vpop.permute.xlu0 %1001
    %1003 = vrot.lane.b32.xlu0 %v756, 48
    %v1004 = vpop.permute.xlu0 %1003
    %1005 = vrot.lane.b32.xlu0 %v790, 48
    %v1006 = vpop.permute.xlu0 %1005
    %1007 = vrot.lane.b32.xlu0 %v824, 48
    %v1008 = vpop.permute.xlu0 %1007
    %1009 = vrot.lane.b32.xlu0 %v858, 48
    %v1010 = vpop.permute.xlu0 %1009
    %1011 = vrot.lane.b32.xlu0 %v892, 48
    %v1012 = vpop.permute.xlu0 %1011
    %1013 = vrot.lane.b32.xlu0 %v926, 48
    %v1014 = vpop.permute.xlu0 %1013
    %vm1023 = vcmask 130048
    %v1024 = vsel %vm1023, %v679, %v936
    %v1025 = vsel %vm1023, %v713, %v938
    %v1026 = vsel %vm1023, %v747, %v940
    %v1027 = vsel %vm1023, %v781, %v942
    %v1028 = vsel %vm1023, %v815, %v944
    %v1029 = vsel %vm1023, %v849, %v946
    %v1030 = vsel %vm1023, %v883, %v948
    %v1031 = vsel %vm1023, %v917, %v950
    %vm1032 = vcmask 261120
    %v1033 = vsel %vm1032, %v1024, %v968
    %v1034 = vsel %vm1032, %v1025, %v970
    %v1035 = vsel %vm1032, %v1026, %v972
    %v1036 = vsel %vm1032, %v1027, %v974
    %v1037 = vsel %vm1032, %v1028, %v976
    %v1038 = vsel %vm1032, %v1029, %v978
    %v1039 = vsel %vm1032, %v1030, %v980
    %v1040 = vsel %vm1032, %v1031, %v982
    %vm1041 = vcmask 392192
    %v1042 = vsel %vm1041, %v1033, %v1000
    %v1043 = vsel %vm1041, %v1034, %v1002
    %v1044 = vsel %vm1041, %v1035, %v1004
    %v1045 = vsel %vm1041, %v1036, %v1006
    %v1046 = vsel %vm1041, %v1037, %v1008
    %v1047 = vsel %vm1041, %v1038, %v1010
    %v1048 = vsel %vm1041, %v1039, %v1012
    %v1049 = vsel %vm1041, %v1040, %v1014
    %vm1050 = vcmask 519168
    %1051 = vst.msk [vmem:[#allocation5] sm:$0xf] %vm1050, %v1042
    %1052 = vst.msk [vmem:[#allocation5 + $0x4] sm:$0xf] %vm1050, %v1043
    %1053 = vst.msk [vmem:[#allocation5 + $0x8] sm:$0xf] %vm1050, %v1044
    %1054 = vst.msk [vmem:[#allocation5 + $0xc] sm:$0xf] %vm1050, %v1045
    %1055 = vst.msk [vmem:[#allocation5 + $0x10] sm:$0xf] %vm1050, %v1046
    %1056 = vst.msk [vmem:[#allocation5 + $0x14] sm:$0xf] %vm1050, %v1047
    %1057 = vst.msk [vmem:[#allocation5 + $0x18] sm:$0xf] %vm1050, %v1048
    %1058 = vst.msk [vmem:[#allocation5 + $0x1c] sm:$0xf] %vm1050, %v1049
    // Predicated region
    $region10: #{tpu_custom_call.1} parent=1 // pred_check
      _
    $region11: #{tpu_custom_call.1} parent=1 // pred_check_branch
      %1060 = sbr.rel (0) target = $region13
    $region12: #{tpu_custom_call.1} parent=1 // pred_region
      %s1062 = ssub.s32 512, 512
      %1063 = vsyncadd [#allocation4], %s1062
      %s1064 = sshll.u32 [#allocation5], 4
      %s1065 = int_to_ptr.vmem [resolvable:$true] %s1064
      %1070 = dma.vmem_to_hbm [thread:$0]  %s1065, 512, %s1, [#allocation4], 64, 64, 4
    $region13: #{tpu_custom_call.1} parent=1 // pred_fallthru
      _
    // Predicated region
    $region14: #{tpu_custom_call.1} parent=1 // pred_check
      _
    $region15: #{tpu_custom_call.1} parent=1 // pred_check_branch
      %1072 = sbr.rel (0) target = $region17
    $region16: #{tpu_custom_call.1} parent=1 // pred_region
      %1073 = dma.done [#allocation4], 512
    $region17: #{tpu_custom_call.1} parent=1 // pred_fallthru
      _
    %1074 = vsyncpa [#allocation3], 1
    %1075 = vsyncpa [#allocation4], 1

</llo_original>
